<compile_context>
chip_gen: v5e
topology: v5e:2x2
jax: 0.10.0
libtpu: 0.0.40
codegen_flags: <defaults>
</compile_context>

<pallas_src>
import jax
import jax.numpy as jnp
from jax import lax
from jax.experimental import pallas as pl
from jax.experimental.pallas import tpu as pltpu

# Static tile candidates: big tiles amortize the ~0.35 us per-grid-step overhead,
# and a fixed set keeps the number of distinct pallas_call compilations small.
_TILE_CANDIDATES = (8192, 4096, 2048, 1024, 512, 256, 128, 64, 32, 16, 8)


def _digital_net_kernel(x_ref, w1_ref, w2_ref, o_ref):
    # hidden = relu(x @ W1^T) -- trans_b contraction, W1 stays in PyTorch (32, in_dim) layout.
    h = lax.dot_general(
        x_ref[...], w1_ref[...],
        dimension_numbers=(((1,), (1,)), ((), ())),
        preferred_element_type=jnp.float32,
    )
    h = jnp.maximum(h, 0.0)
    # out = hidden @ W2^T -- W2 stays in PyTorch (16, 32) layout; the (tb, 16) result
    # block has its last dim equal to the full output dim, so layout rules are met.
    o_ref[...] = lax.dot_general(
        h, w2_ref[...],
        dimension_numbers=(((1,), (1,)), ((), ())),
        preferred_element_type=jnp.float32,
    ).astype(o_ref.dtype)


def _choose_batch_tile(batch):
    """Pick a batch tile from a static candidate set.

    * batch <= 8: block equals the full batch dim (satisfies the (8,128) rule), grid = 1.
    * batch >= 16: largest power-of-two tile <= batch // 2, so the grid has >= 2 steps
      (v7x megacore sharding) while staying large enough to amortize per-step overhead.
    """
    if batch <= 8:
        return batch
    target = max(8, batch // 2)
    for tb in _TILE_CANDIDATES:
        if tb <= target:
            return tb
    return 8


def digital_network_forward(x, w1, w2):
    """Forward pass of DigitalNetwork.

    x  : (batch, num_of_adc_p * num_samples_L_tilde)
    w1 : (32, num_of_adc_p * num_samples_L_tilde)   -- fc1.weight (PyTorch layout)
    w2 : (16, 32)                                   -- fc2.weight (PyTorch layout)
    returns (batch, 16)
    """
    batch, in_dim = x.shape
    hidden = w1.shape[0]   # 32
    out_dim = w2.shape[0]  # 16

    tb = _choose_batch_tile(batch)
    grid = (pl.cdiv(batch, tb),)

    itemsize = jnp.dtype(x.dtype).itemsize
    flops = 2 * batch * (in_dim * hidden + hidden * out_dim)
    bytes_accessed = (x.size + w1.size + w2.size + batch * out_dim) * itemsize

    return pl.pallas_call(
        _digital_net_kernel,
        out_shape=jax.ShapeDtypeStruct((batch, out_dim), x.dtype),
        grid=grid,
        in_specs=[
            # x: tiled over batch, pipelined (DMA of tile i+1 overlaps compute of tile i).
            pl.BlockSpec((tb, in_dim), lambda i: (i, 0)),
            # weights: constant index_map -> loaded once, VMEM-resident across grid steps.
            pl.BlockSpec((hidden, in_dim), lambda i: (0, 0)),
            pl.BlockSpec((out_dim, hidden), lambda i: (0, 0)),
        ],
        out_specs=pl.BlockSpec((tb, out_dim), lambda i: (i, 0)),
        compiler_params=pltpu.CompilerParams(
            # batch tiles are independent -> megacore-shardable on v7x.
            dimension_semantics=("parallel",),
        ),
        cost_estimate=pl.CostEstimate(
            flops=flops, transcendentals=0, bytes_accessed=bytes_accessed),
    )(x, w1, w2)


def _reference_forward(x, w1, w2):
    h = jnp.maximum(x @ w1.T, 0.0)
    return h @ w2.T


if __name__ == "__main__":
    # Module hyperparameters (small, consistent with the constructor signature).
    num_of_adc_p = 4
    num_samples_L_tilde = 8
    in_dim = num_of_adc_p * num_samples_L_tilde  # 32
    hidden = 32
    out_dim = 16
    batch = 8

    key = jax.random.PRNGKey(0)
    kx, k1, k2 = jax.random.split(key, 3)

    # Deterministic parameter init mimicking PyTorch Linear default
    # (uniform in [-1/sqrt(fan_in), 1/sqrt(fan_in)]), no bias.
    bound1 = 1.0 / jnp.sqrt(jnp.float32(in_dim))
    bound2 = 1.0 / jnp.sqrt(jnp.float32(hidden))
    w1 = jax.random.uniform(k1, (hidden, in_dim), jnp.float32, -bound1, bound1)
    w2 = jax.random.uniform(k2, (out_dim, hidden), jnp.float32, -bound2, bound2)

    x = jax.random.normal(kx, (batch, in_dim), jnp.float32)

    out = digital_network_forward(x, w1, w2)
    out = jax.block_until_ready(out)

    ref = _reference_forward(x, w1, w2)
    assert out.shape == (batch, out_dim)
    assert jnp.allclose(out, ref, atol=1e-5, rtol=1e-5)

    # Also exercise the multi-tile path (grid > 1, partial last block).
    big_batch = 100
    xb = jax.random.normal(kx, (big_batch, in_dim), jnp.float32)
    out_b = jax.block_until_ready(digital_network_forward(xb, w1, w2))
    assert out_b.shape == (big_batch, out_dim)
    assert jnp.allclose(out_b, _reference_forward(xb, w1, w2), atol=1e-5, rtol=1e-5)

    print("KERNEL_OK")
</pallas_src>

<mosaic_0001>
module attributes {stable_mosaic.version = 11 : i64} {
  func.func @_digital_net_kernel(%arg0: i32, %arg1: memref<8x32xf32, #tpu.memory_space<vmem>>, %arg2: memref<32x32xf32, #tpu.memory_space<vmem>>, %arg3: memref<16x32xf32, #tpu.memory_space<vmem>>, %arg4: memref<8x16xf32, #tpu.memory_space<vmem>>) attributes {dimension_semantics = [#tpu.dimension_semantics<parallel>], iteration_bounds = array<i64: 1>, scalar_prefetch = 0 : i64, scratch_operands = 0 : i64, tpu.core_type = #tpu.core_type<tc>, window_params = [{transform_indices = @transform_0, window_bounds = array<i64: 8, 32>}, {pipeline_mode = #tpu.pipeline_mode<synchronous>, transform_indices = @transform_1, window_bounds = array<i64: 32, 32>}, {pipeline_mode = #tpu.pipeline_mode<synchronous>, transform_indices = @transform_2, window_bounds = array<i64: 16, 32>}, {transform_indices = @transform_3, window_bounds = array<i64: 8, 16>}]} {
    %c0 = arith.constant 0 : index
    %c0_0 = arith.constant 0 : index
    %0 = vector.load %arg1[%c0, %c0_0] : memref<8x32xf32, #tpu.memory_space<vmem>>, vector<8x32xf32>
    %c0_1 = arith.constant 0 : index
    %c0_2 = arith.constant 0 : index
    %1 = vector.load %arg2[%c0_1, %c0_2] : memref<32x32xf32, #tpu.memory_space<vmem>>, vector<32x32xf32>
    %cst = arith.constant dense<0.000000e+00> : vector<8x32xf32>
    %2 = tpu.matmul %0, %1, %cst {dimension_numbers = #tpu.dot_dimension_numbers<[1], [1], [0], [0], [0, 0, 1, 0], [], []>} : vector<8x32xf32>, vector<32x32xf32>, vector<8x32xf32> -> vector<8x32xf32>
    %cst_3 = arith.constant 0.000000e+00 : f32
    %3 = vector.broadcast %cst_3 : f32 to vector<8x32xf32>
    %4 = arith.maximumf %2, %3 : vector<8x32xf32>
    %c0_4 = arith.constant 0 : index
    %c0_5 = arith.constant 0 : index
    %5 = vector.load %arg3[%c0_4, %c0_5] : memref<16x32xf32, #tpu.memory_space<vmem>>, vector<16x32xf32>
    %cst_6 = arith.constant dense<0.000000e+00> : vector<8x16xf32>
    %6 = tpu.matmul %4, %5, %cst_6 {dimension_numbers = #tpu.dot_dimension_numbers<[1], [1], [0], [0], [0, 0, 1, 0], [], []>} : vector<8x32xf32>, vector<16x32xf32>, vector<8x16xf32> -> vector<8x16xf32>
    %c0_7 = arith.constant 0 : index
    %c0_8 = arith.constant 0 : index
    %7 = vector.load %arg4[%c0_7, %c0_8] : memref<8x16xf32, #tpu.memory_space<vmem>>, vector<8x16xf32>
    tpu.vector_store %arg4[%c0_7, %c0_8], %6 {strides = array<i32>} : memref<8x16xf32, #tpu.memory_space<vmem>>, vector<8x16xf32>,
    return
  }
  func.func @transform_0(%arg0: i32) -> (i32, i32) {
    %c0_i32 = arith.constant 0 : i32
    %c0_i32_0 = arith.constant 0 : i32
    return %arg0, %c0_i32 : i32, i32
  }
  func.func @transform_1(%arg0: i32) -> (i32, i32) {
    %c0_i32 = arith.constant 0 : i32
    %c0_i32_0 = arith.constant 0 : i32
    %c0_i32_1 = arith.constant 0 : i32
    return %c0_i32, %c0_i32_0 : i32, i32
  }
  func.func @transform_2(%arg0: i32) -> (i32, i32) {
    %c0_i32 = arith.constant 0 : i32
    %c0_i32_0 = arith.constant 0 : i32
    %c0_i32_1 = arith.constant 0 : i32
    return %c0_i32, %c0_i32_0 : i32, i32
  }
  func.func @transform_3(%arg0: i32) -> (i32, i32) {
    %c0_i32 = arith.constant 0 : i32
    %c0_i32_0 = arith.constant 0 : i32
    return %arg0, %c0_i32 : i32, i32
  }
}

</mosaic_0001>

<llo_original>
// kernel: tpu_custom_call.1
$region0: #{tpu_custom_call.1}
  #allocation0 [shape = 'u32[]', space=smem, size = 0x4, offset = 0x4, fixed_abs, tag = 'smem constant byte address 0x4 - core index']
  #allocation1 [shape = 'u32[72,128]{1,0:T(1,128)}', space=vmem, size = 0x9000, scoped, tag = 'internal scratch']
  %s0 = inlined_call_operand.hbm [shape: f32[8,32], index: 0, kind: input, shape index: {}]
  %s1 = inlined_call_operand.hbm [shape: f32[32,32], index: 1, kind: input, shape index: {}]
  %s2 = inlined_call_operand.hbm [shape: f32[16,32], index: 2, kind: input, shape index: {}]
  %s3 = inlined_call_operand.hbm [shape: f32[8,16], index: 3, kind: output, shape index: {}]
  %s4 = sld [smem:[#allocation0]]
  $region34: #{tpu_custom_call.1} parent=0
    _
  %s6 = ssub.s32 1, %s4
  %s7 = scalar_select 0, %s6, %s4
  $region1: #{tpu_custom_call.1} parent=0
    #allocation2 [shape = 'u8[4096]{0}', space=vmem, size = 0x1000, scoped, tag = 'input window, operand 0, single buffered']
    #allocation3 [shape = 's32[1]{0}', space=sflag, size = 0x4, scoped, tag = 'scoped memory for tpu_custom_call.1']
    #allocation4 [shape = 's32[1]{0}', space=sflag, size = 0x4, scoped, tag = 'scoped memory for tpu_custom_call.1']
    #allocation5 [shape = 'u8[16384]{0}', space=vmem, size = 0x4000, scoped, tag = 'input window, operand 1, single buffered']
    #allocation6 [shape = 's32[1]{0}', space=sflag, size = 0x4, scoped, tag = 'scoped memory for tpu_custom_call.1']
    #allocation7 [shape = 'u8[8192]{0}', space=vmem, size = 0x2000, scoped, tag = 'input window, operand 2, single buffered']
    #allocation8 [shape = 'u8[4096]{0}', space=vmem, size = 0x1000, scoped, tag = 'output window, operand 0, single buffered']
    %8 = vsyncpa [#allocation3], 0
    %9 = vsyncpa [#allocation6], 0
    %10 = vsyncpa [#allocation4], 0
    // Predicated region
    $region2: #{tpu_custom_call.1} parent=1 // pred_check
      _
    $region3: #{tpu_custom_call.1} parent=1 // pred_check_branch
      %12 = sbr.rel (0) target = $region5
    $region4: #{tpu_custom_call.1} parent=1 // pred_region
      %14 = vsyncadd [#allocation3], 0
      %s16 = sshll.u32 %s0, 4
      %s17 = int_to_ptr.hbm [resolvable:$true] %s16
      %s18 = sshll.u32 [#allocation2], 4
      %s19 = int_to_ptr.vmem [resolvable:$true] %s18
      %21 = dma.hbm_to_vmem [thread:$0]  %s17, 128, %s19, [#allocation3]
    $region5: #{tpu_custom_call.1} parent=1 // pred_fallthru
      _
    // Predicated region
    $region6: #{tpu_custom_call.1} parent=1 // pred_check
      _
    $region7: #{tpu_custom_call.1} parent=1 // pred_check_branch
      %23 = sbr.rel (0) target = $region9
    $region8: #{tpu_custom_call.1} parent=1 // pred_region
      %25 = vsyncadd [#allocation6], 0
      %s26 = sshll.u32 %s1, 4
      %s27 = int_to_ptr.hbm [resolvable:$true] %s26
      %s28 = sshll.u32 [#allocation5], 4
      %s29 = int_to_ptr.vmem [resolvable:$true] %s28
      %34 = dma.hbm_to_vmem [thread:$0]  %s27, 512, %s29, [#allocation6], 128, 128, 8
    $region9: #{tpu_custom_call.1} parent=1 // pred_fallthru
      _
    // Predicated region
    $region10: #{tpu_custom_call.1} parent=1 // pred_check
      _
    $region11: #{tpu_custom_call.1} parent=1 // pred_check_branch
      %36 = sbr.rel (0) target = $region13
    $region12: #{tpu_custom_call.1} parent=1 // pred_region
      %38 = vsyncadd [#allocation6], 0
      %s39 = sshll.u32 %s2, 4
      %s40 = int_to_ptr.hbm [resolvable:$true] %s39
      %s41 = sshll.u32 [#allocation7], 4
      %s42 = int_to_ptr.vmem [resolvable:$true] %s41
      %47 = dma.hbm_to_vmem [thread:$0]  %s40, 256, %s42, [#allocation6], 128, 128, 8
    $region13: #{tpu_custom_call.1} parent=1 // pred_fallthru
      _
    // Predicated region
    $region14: #{tpu_custom_call.1} parent=1 // pred_check
      _
    $region15: #{tpu_custom_call.1} parent=1 // pred_check_branch
      %49 = sbr.rel (0) target = $region17
    $region16: #{tpu_custom_call.1} parent=1 // pred_region
      %51 = dma.done [#allocation3], 128
    $region17: #{tpu_custom_call.1} parent=1 // pred_fallthru
      _
    // Predicated region
    $region18: #{tpu_custom_call.1} parent=1 // pred_check
      _
    $region19: #{tpu_custom_call.1} parent=1 // pred_check_branch
      %53 = sbr.rel (0) target = $region21
    $region20: #{tpu_custom_call.1} parent=1 // pred_region
      %55 = dma.done [#allocation6], 512
    $region21: #{tpu_custom_call.1} parent=1 // pred_fallthru
      _
    // Predicated region
    $region22: #{tpu_custom_call.1} parent=1 // pred_check
      _
    $region23: #{tpu_custom_call.1} parent=1 // pred_check_branch
      %57 = sbr.rel (0) target = $region25
    $region24: #{tpu_custom_call.1} parent=1 // pred_region
      %59 = dma.done [#allocation6], 256
    $region25: #{tpu_custom_call.1} parent=1 // pred_fallthru
      _
    %v60 = vld [vmem:[#allocation2] sm:$0xff]
    %v61 = vld [vmem:[#allocation5] sm:$0xff]
    %v62 = vld [vmem:[#allocation5 + $0x8] sm:$0xff]
    %v63 = vld [vmem:[#allocation5 + $0x10] sm:$0xff]
    %v64 = vld [vmem:[#allocation5 + $0x18] sm:$0xff]
    %vm65 = vcmask 261120
    %v67 = vsel %vm65, %v60, 0
    %v70 = vsel %vm65, %v61, 0
    %v73 = vsel %vm65, %v62, 0
    %v76 = vsel %vm65, %v63, 0
    %v79 = vsel %vm65, %v64, 0
    %81 = vmatpush.xpose.msra.mxu0 0.0
    %82 = vmatpush.xpose.msra.mxu0 0.0
    %83 = vmatpush.xpose.msra.mxu0 0.0
    %84 = vmatpush.xpose.msra.mxu0 0.0
    %85 = vmatpush.xpose.msra.mxu0 0.0
    %86 = vmatpush.xpose.msra.mxu0 0.0
    %87 = vmatpush.xpose.msra.mxu0 0.0
    %88 = vmatpush.xpose.msra.mxu0 0.0
    %89 = vmatpush.xpose.msra.mxu0 0.0
    %90 = vmatpush.xpose.msra.mxu0 0.0
    %91 = vmatpush.xpose.msra.mxu0 0.0
    %92 = vmatpush.xpose.msra.mxu0 0.0
    %93 = vmatpush.xpose.msra.mxu0 %v79
    %94 = vmatpush.xpose.msra.mxu0 %v76
    %95 = vmatpush.xpose.msra.mxu0 %v73
    %96 = vmatpush.xpose.msra.mxu0 %v70
    %97 = vmatmul.f32.gmra.mxu0 %v67
    %v98 = vpop.f32.mrf.mxu0
    %v99 = vadd.f32 0.0, %v98
    %100 = vdwg.mxu0
    %v101 = vmax.f32 %v99, 0.0
    %v102 = vld [vmem:[#allocation7] sm:$0xff]
    %v103 = vld [vmem:[#allocation7 + $0x8] sm:$0xff]
    %v105 = vsel %vm65, %v101, 0
    %v108 = vsel %vm65, %v102, 0
    %v111 = vsel %vm65, %v103, 0
    %113 = vmatpush.xpose.msra.mxu0 0.0
    %114 = vmatpush.xpose.msra.mxu0 0.0
    %115 = vmatpush.xpose.msra.mxu0 0.0
    %116 = vmatpush.xpose.msra.mxu0 0.0
    %117 = vmatpush.xpose.msra.mxu0 0.0
    %118 = vmatpush.xpose.msra.mxu0 0.0
    %119 = vmatpush.xpose.msra.mxu0 0.0
    %120 = vmatpush.xpose.msra.mxu0 0.0
    %121 = vmatpush.xpose.msra.mxu0 0.0
    %122 = vmatpush.xpose.msra.mxu0 0.0
    %123 = vmatpush.xpose.msra.mxu0 0.0
    %124 = vmatpush.xpose.msra.mxu0 0.0
    %125 = vmatpush.xpose.msra.mxu0 0.0
    %126 = vmatpush.xpose.msra.mxu0 0.0
    %127 = vmatpush.xpose.msra.mxu0 %v111
    %128 = vmatpush.xpose.msra.mxu0 %v108
    %129 = vmatmul.f32.gmra.mxu0 %v105
    %v130 = vpop.f32.mrf.mxu0
    %v131 = vadd.f32 0.0, %v130
    %132 = vdwg.mxu0
    %vm133 = vcmask 130048
    %134 = vst.msk [vmem:[#allocation8] sm:$0xff] %vm133, %v131
    // Predicated region
    $region26: #{tpu_custom_call.1} parent=1 // pred_check
      _
    $region27: #{tpu_custom_call.1} parent=1 // pred_check_branch
      %136 = sbr.rel (0) target = $region29
    $region28: #{tpu_custom_call.1} parent=1 // pred_region
      %138 = vsyncadd [#allocation4], 0
      %s140 = sshll.u32 [#allocation8], 4
      %s141 = int_to_ptr.vmem [resolvable:$true] %s140
      %s142 = sshll.u32 %s3, 4
      %s143 = int_to_ptr.hbm [resolvable:$true] %s142
      %145 = dma.vmem_to_hbm [thread:$0]  %s141, 128, %s143, [#allocation4]
    $region29: #{tpu_custom_call.1} parent=1 // pred_fallthru
      _
    // Predicated region
    $region30: #{tpu_custom_call.1} parent=1 // pred_check
      _
    $region31: #{tpu_custom_call.1} parent=1 // pred_check_branch
      %147 = sbr.rel (0) target = $region33
    $region32: #{tpu_custom_call.1} parent=1 // pred_region
      %149 = dma.done [#allocation4], 128
    $region33: #{tpu_custom_call.1} parent=1 // pred_fallthru
      _
    %150 = vsyncpa [#allocation3], 1
    %151 = vsyncpa [#allocation6], 1
    %152 = vsyncpa [#allocation4], 1

</llo_original>
